<compile_context>
chip_gen: v7x
topology: tpu7x:2x2x1
jax: 0.10.0
libtpu: 0.0.40
codegen_flags: <defaults>
</compile_context>

<pallas_src>
import jax
import jax.numpy as jnp
from jax import lax
from jax.experimental import pallas as pl
from jax.experimental.pallas import tpu as pltpu


def _round_up(x, m):
    return (x + m - 1) // m * m


def _choose_tile_l(L_out, C, N):
    """Pick the output-length tile (multiple of 128 when tiled)."""
    if C <= 128:
        tl = 2048          # large tiles for small C (v5e/v6e: 128 MiB VMEM headroom)
    elif C <= 256:
        tl = 1024
    elif C <= 512:
        tl = 512
    elif C <= 768:
        tl = 256
    else:
        tl = 128           # keep the working set small inside v7x's 64 MiB VMEM
    if L_out <= tl:
        # Single tile fits.  Split it in two when batch == 1 so the fully
        # parallel grid has >= 2 steps (v7x has 2 TensorCores per chip).
        if N == 1 and L_out > 256:
            return _round_up((L_out + 1) // 2, 128)
        return L_out
    return tl


def _downsample1d_kernel(x_ref, halo_ref, w01_ref, w2_ref, b_ref, o_ref):
    # x_ref:    (1, 1, TL, 2*C)  row j = [x_pad[2j] chans, x_pad[2j+1] chans]
    # halo_ref: (1, 1, 1, C)     x_pad[2*TL*(t+1)]  (tap 2 of the tile's last output)
    # w01_ref:  (2*C, C)         [W0; W1] with [c_in, c_out] layout
    # w2_ref:   (C, C)           W2 with [c_in, c_out] layout
    # b_ref:    (1, C)           bias (kept f32)
    # o_ref:    (1, C, TL)       output tile already in NCL (lane-dense along L)
    C = o_ref.shape[1]
    TL = o_ref.shape[2]

    xb = x_ref[0, 0]                                            # (TL, 2C) contiguous load
    # Taps 0 + 1 in a single MXU pass: contraction depth 2C.
    acc = jnp.dot(xb, w01_ref[...], preferred_element_type=jnp.float32)

    # Tap 2: x_pad[2j+2] = tap-0 channels of row j+1; last row comes from the halo.
    if TL > 1:
        t2 = jnp.concatenate([xb[1:, :C], halo_ref[0, 0]], axis=0)   # (TL, C)
    else:
        t2 = halo_ref[0, 0]
    acc = acc + jnp.dot(t2, w2_ref[...], preferred_element_type=jnp.float32)
    acc = acc + b_ref[...]                                      # (1, C) broadcast

    # Cast first (possibly narrower), then transpose (TL, C) -> (C, TL) on the
    # XLU so the store is lane-dense along L (no wrapper output pass needed).
    o_ref[0] = jnp.transpose(acc.astype(o_ref.dtype))


def downsample1d_pallas(x, weight, bias, *, compute_dtype=None):
    """Conv1d(dim, dim, kernel=3, stride=2, padding=1) forward.

    x: (N, C, L); weight: (C, C, 3); bias: (C,).  Returns (N, C, L_out) in x.dtype.
    compute_dtype: optional dtype (e.g. jnp.bfloat16) for the data path; the
    MXU accumulation is always f32.
    """
    N, C, L = x.shape
    K = weight.shape[-1]                       # 3
    stride, pad = 2, 1
    L_out = (L + 2 * pad - K) // stride + 1
    if compute_dtype is None:
        compute_dtype = x.dtype

    TL = _choose_tile_l(L_out, C, N)
    n_tiles = pl.cdiv(L_out, TL)
    L_out_pad = n_tiles * TL

    # --- one layout pass (fused by XLA): NCL -> NLC, cast, zero pad the length
    x_cl = jnp.transpose(x, (0, 2, 1)).astype(compute_dtype)            # (N, L, C)
    rows = 2 * L_out_pad + 1                                            # main rows + halo rows
    x_padded = jnp.pad(x_cl, ((0, 0), (pad, rows - L - pad), (0, 0)))   # (N, rows, C)
    # Pair taps 0/1: pure row-major reshape, zero extra HBM work.
    x_main = x_padded[:, :2 * L_out_pad, :].reshape(N, n_tiles, TL, 2 * C)
    # One shared halo row per tile (padded positions 2*TL, 4*TL, ...).
    x_halo = x_padded[:, 2 * TL::2 * TL, :].reshape(N, n_tiles, 1, C)

    # Weights as [c_in, c_out]; W0/W1 stacked for the paired contraction.
    w_kio = jnp.transpose(weight, (2, 1, 0)).astype(compute_dtype)      # (3, C, C)
    w01 = w_kio[:2].reshape(2 * C, C)                                   # (2C, C)
    w2 = w_kio[2]                                                       # (C, C)
    b_mat = bias.reshape(1, C).astype(jnp.float32)

    # VMEM working-set estimate -> explicit (bounded) scoped-VMEM limit.
    cisz = jnp.dtype(compute_dtype).itemsize
    oisz = jnp.dtype(x.dtype).itemsize
    vmem_est = (
        2 * TL * 2 * C * cisz            # paired-input block, double-buffered
        + 2 * 8 * max(C, 128) * cisz     # halo block (padded to an (8,128) tile)
        + 2 * (2 * C) * C * cisz         # W0/W1 (constant index_map, fetched once)
        + 2 * C * C * cisz               # W2
        + 2 * 8 * max(C, 128) * 4        # bias (f32)
        + 2 * C * TL * oisz              # output block, double-buffered
        + 4 * TL * C * 4                 # f32 accumulator / tap-2 / transpose temps
    )
    vmem_limit = int(min(40 * 1024 * 1024, max(16 * 1024 * 1024, 2 * vmem_est)))

    out = pl.pallas_call(
        _downsample1d_kernel,
        out_shape=jax.ShapeDtypeStruct((N, C, L_out_pad), x.dtype),
        grid_spec=pltpu.PrefetchScalarGridSpec(
            num_scalar_prefetch=0,
            grid=(N, n_tiles),
            in_specs=[
                pl.BlockSpec((1, 1, TL, 2 * C), lambda b, t: (b, t, 0, 0)),
                pl.BlockSpec((1, 1, 1, C), lambda b, t: (b, t, 0, 0)),
                pl.BlockSpec((2 * C, C), lambda b, t: (0, 0)),   # VMEM-resident weights
                pl.BlockSpec((C, C), lambda b, t: (0, 0)),
                pl.BlockSpec((1, C), lambda b, t: (0, 0)),       # VMEM-resident bias
            ],
            out_specs=pl.BlockSpec((1, C, TL), lambda b, t: (b, 0, t)),
        ),
        compiler_params=pltpu.CompilerParams(
            dimension_semantics=("parallel", "parallel"),
            vmem_limit_bytes=vmem_limit,
        ),
    )(x_main, x_halo, w01, w2, b_mat)                                   # (N, C, L_out_pad)

    if L_out_pad != L_out:
        out = out[:, :, :L_out]
    return out


def _reference_conv1d(x, weight, bias):
    y = lax.conv_general_dilated(
        x, weight,
        window_strides=(2,),
        padding=[(1, 1)],
        dimension_numbers=("NCH", "OIH", "NCH"),
    )
    return y + bias[None, :, None]


def _make_params(key, C):
    k_w, k_b = jax.random.split(key)
    fan_in = C * 3
    bound = 1.0 / (fan_in ** 0.5)
    weight = jax.random.uniform(k_w, (C, C, 3), minval=-bound, maxval=bound,
                                dtype=jnp.float32)
    bias = jax.random.uniform(k_b, (C,), minval=-bound, maxval=bound,
                              dtype=jnp.float32)
    return weight, bias


if __name__ == "__main__":
    key = jax.random.PRNGKey(0)
    k1, k2, k3 = jax.random.split(key, 3)
    down = jax.jit(downsample1d_pallas, static_argnames=("compute_dtype",))

    # Small shape consistent with the module (batch=2, channels=4, length=16).
    N, C, L = 2, 4, 16
    x = jax.random.normal(k1, (N, C, L), dtype=jnp.float32)
    weight, bias = _make_params(k2, C)
    y = jax.block_until_ready(down(x, weight, bias))
    y_ref = _reference_conv1d(x, weight, bias)
    assert y.shape == y_ref.shape, (y.shape, y_ref.shape)
    assert jnp.allclose(y, y_ref, atol=1e-5, rtol=1e-5), "mismatch vs reference conv (small)"

    # Second shape: batch==1 grid split, multi-tile halo path, padded L_out slice-back.
    N2, C2, L2 = 1, 8, 1040
    x2 = jax.random.normal(k3, (N2, C2, L2), dtype=jnp.float32)
    weight2, bias2 = _make_params(k2, C2)
    y2 = jax.block_until_ready(down(x2, weight2, bias2))
    y2_ref = _reference_conv1d(x2, weight2, bias2)
    assert y2.shape == y2_ref.shape, (y2.shape, y2_ref.shape)
    assert jnp.allclose(y2, y2_ref, atol=1e-5, rtol=1e-5), "mismatch vs reference conv (tiled)"

    # bf16 data path (halved HBM traffic, native MXU rate); f32 accumulation,
    # so only the input/weight rounding shows up -> looser tolerance.
    y2_bf16 = jax.block_until_ready(down(x2, weight2, bias2, compute_dtype=jnp.bfloat16))
    assert jnp.allclose(y2_bf16, y2_ref, atol=5e-2, rtol=5e-2), "mismatch vs reference (bf16)"

    print("KERNEL_OK")
</pallas_src>

<mosaic_0001>
module attributes {stable_mosaic.version = 11 : i64} {
  func.func @_downsample1d_kernel(%arg0: i32, %arg1: i32, %arg2: memref<1x1x8x8xf32, #tpu.memory_space<vmem>>, %arg3: memref<1x1x1x4xf32, #tpu.memory_space<vmem>>, %arg4: memref<8x4xf32, #tpu.memory_space<vmem>>, %arg5: memref<4x4xf32, #tpu.memory_space<vmem>>, %arg6: memref<1x4xf32, #tpu.memory_space<vmem>>, %arg7: memref<1x4x8xf32, #tpu.memory_space<vmem>>) attributes {dimension_semantics = [#tpu.dimension_semantics<parallel>, #tpu.dimension_semantics<parallel>], iteration_bounds = array<i64: 2, 1>, scalar_prefetch = 0 : i64, scratch_operands = 0 : i64, tpu.core_type = #tpu.core_type<tc>, window_params = [{transform_indices = @transform_0, window_bounds = array<i64: 1, 1, 8, 8>}, {transform_indices = @transform_1, window_bounds = array<i64: 1, 1, 1, 4>}, {pipeline_mode = #tpu.pipeline_mode<synchronous>, transform_indices = @transform_2, window_bounds = array<i64: 8, 4>}, {pipeline_mode = #tpu.pipeline_mode<synchronous>, transform_indices = @transform_3, window_bounds = array<i64: 4, 4>}, {pipeline_mode = #tpu.pipeline_mode<synchronous>, transform_indices = @transform_4, window_bounds = array<i64: 1, 4>}, {transform_indices = @transform_5, window_bounds = array<i64: 1, 4, 8>}]} {
    %c0 = arith.constant 0 : index
    %c0_0 = arith.constant 0 : index
    %c0_1 = arith.constant 0 : index
    %c0_2 = arith.constant 0 : index
    %0 = vector.load %arg2[%c0, %c0_0, %c0_1, %c0_2] : memref<1x1x8x8xf32, #tpu.memory_space<vmem>>, vector<1x1x8x8xf32>
    %1 = vector.shape_cast %0 : vector<1x1x8x8xf32> to vector<8x8xf32>
    %c0_3 = arith.constant 0 : index
    %c0_4 = arith.constant 0 : index
    %2 = vector.load %arg4[%c0_3, %c0_4] : memref<8x4xf32, #tpu.memory_space<vmem>>, vector<8x4xf32>
    %cst = arith.constant dense<0.000000e+00> : vector<8x4xf32>
    %3 = tpu.matmul %1, %2, %cst {dimension_numbers = #tpu.dot_dimension_numbers<[1], [0], [0], [1], [0, 0, 1, 1], [], []>} : vector<8x8xf32>, vector<8x4xf32>, vector<8x4xf32> -> vector<8x4xf32>
    %4 = vector.extract_strided_slice %1 {offsets = [1, 0], sizes = [7, 4], strides = [1, 1]} : vector<8x8xf32> to vector<7x4xf32>
    %c0_5 = arith.constant 0 : index
    %c0_6 = arith.constant 0 : index
    %c0_7 = arith.constant 0 : index
    %c0_8 = arith.constant 0 : index
    %5 = vector.load %arg3[%c0_5, %c0_6, %c0_7, %c0_8] : memref<1x1x1x4xf32, #tpu.memory_space<vmem>>, vector<1x1x1x4xf32>
    %6 = vector.shape_cast %5 : vector<1x1x1x4xf32> to vector<1x4xf32>
    %7 = tpu.concatenate %4, %6 in 0 : vector<7x4xf32>, vector<1x4xf32> -> vector<8x4xf32>
    %c0_9 = arith.constant 0 : index
    %c0_10 = arith.constant 0 : index
    %8 = vector.load %arg5[%c0_9, %c0_10] : memref<4x4xf32, #tpu.memory_space<vmem>>, vector<4x4xf32>
    %cst_11 = arith.constant dense<0.000000e+00> : vector<8x4xf32>
    %9 = tpu.matmul %7, %8, %cst_11 {dimension_numbers = #tpu.dot_dimension_numbers<[1], [0], [0], [1], [0, 0, 1, 1], [], []>} : vector<8x4xf32>, vector<4x4xf32>, vector<8x4xf32> -> vector<8x4xf32>
    %10 = arith.addf %3, %9 : vector<8x4xf32>
    %c0_12 = arith.constant 0 : index
    %c0_13 = arith.constant 0 : index
    %11 = vector.load %arg6[%c0_12, %c0_13] : memref<1x4xf32, #tpu.memory_space<vmem>>, vector<1x4xf32>
    %12 = vector.broadcast %11 : vector<1x4xf32> to vector<8x4xf32>
    %13 = arith.addf %10, %12 : vector<8x4xf32>
    %14 = tpu.transpose %13, [1, 0] : vector<8x4xf32> -> vector<4x8xf32>
    %c0_14 = arith.constant 0 : index
    %c0_15 = arith.constant 0 : index
    %c0_16 = arith.constant 0 : index
    %15 = vector.load %arg7[%c0_14, %c0_15, %c0_16] : memref<1x4x8xf32, #tpu.memory_space<vmem>>, vector<1x4x8xf32>
    %16 = vector.shape_cast %15 : vector<1x4x8xf32> to vector<4x8xf32>
    %17 = vector.shape_cast %14 : vector<4x8xf32> to vector<1x4x8xf32>
    tpu.vector_store %arg7[%c0_14, %c0_15, %c0_16], %17 {strides = array<i32>} : memref<1x4x8xf32, #tpu.memory_space<vmem>>, vector<1x4x8xf32>,
    return
  }
  func.func @transform_0(%arg0: i32, %arg1: i32) -> (i32, i32, i32, i32) {
    %c0_i32 = arith.constant 0 : i32
    %c0_i32_0 = arith.constant 0 : i32
    %c0_i32_1 = arith.constant 0 : i32
    return %arg0, %arg1, %c0_i32, %c0_i32_0 : i32, i32, i32, i32
  }
  func.func @transform_1(%arg0: i32, %arg1: i32) -> (i32, i32, i32, i32) {
    %c0_i32 = arith.constant 0 : i32
    %c0_i32_0 = arith.constant 0 : i32
    %c0_i32_1 = arith.constant 0 : i32
    return %arg0, %arg1, %c0_i32, %c0_i32_0 : i32, i32, i32, i32
  }
  func.func @transform_2(%arg0: i32, %arg1: i32) -> (i32, i32) {
    %c0_i32 = arith.constant 0 : i32
    %c0_i32_0 = arith.constant 0 : i32
    %c0_i32_1 = arith.constant 0 : i32
    return %c0_i32, %c0_i32_0 : i32, i32
  }
  func.func @transform_3(%arg0: i32, %arg1: i32) -> (i32, i32) {
    %c0_i32 = arith.constant 0 : i32
    %c0_i32_0 = arith.constant 0 : i32
    %c0_i32_1 = arith.constant 0 : i32
    return %c0_i32, %c0_i32_0 : i32, i32
  }
  func.func @transform_4(%arg0: i32, %arg1: i32) -> (i32, i32) {
    %c0_i32 = arith.constant 0 : i32
    %c0_i32_0 = arith.constant 0 : i32
    %c0_i32_1 = arith.constant 0 : i32
    return %c0_i32, %c0_i32_0 : i32, i32
  }
  func.func @transform_5(%arg0: i32, %arg1: i32) -> (i32, i32, i32) {
    %c0_i32 = arith.constant 0 : i32
    %c0_i32_0 = arith.constant 0 : i32
    return %arg0, %c0_i32, %arg1 : i32, i32, i32
  }
}

</mosaic_0001>

<llo_original>
// kernel: downsample1d_pallas.1
$region0: #{downsample1d_pallas.1}
  #allocation0 [shape = 'u32[]', space=smem, size = 0x4, offset = 0x4, fixed_abs, tag = 'smem constant byte address 0x4 - core index']
  #allocation1 [shape = 'u32[144,128]{1,0:T(1,128)}', space=vmem, size = 0x12000, scoped, tag = 'internal scratch']
  %s0 = inlined_call_operand.vmem [shape: f32[2,1,8,8], index: 0, kind: input, shape index: {}]
  %s1 = inlined_call_operand.vmem [shape: f32[2,1,1,4], index: 1, kind: input, shape index: {}]
  %s2 = inlined_call_operand.vmem [shape: f32[8,4], index: 2, kind: input, shape index: {}]
  %s3 = inlined_call_operand.vmem [shape: f32[4,4], index: 3, kind: input, shape index: {}]
  %s4 = inlined_call_operand.vmem [shape: f32[1,4], index: 4, kind: input, shape index: {}]
  %s5 = inlined_call_operand.hbm [shape: f32[2,4,8], index: 5, kind: output, shape index: {}]
  %s6 = sld [smem:[#allocation0]]
  $region53: #{downsample1d_pallas.1} parent=0
    _
  %s8 = ssub.s32 1, %s6
  %s9 = scalar_select 0, %s8, %s6
  $region1: #{downsample1d_pallas.1} parent=0
    #allocation2 [shape = 'u8[4096]{0}', space=vmem, size = 0x1000, scoped, tag = 'output window, operand 0']
    #allocation3 [shape = 's32[2]{0}', space=sflag, size = 0x8, scoped, tag = 'scoped memory for downsample1d_pallas.1']
    %10 = vsyncpa [#allocation3], 0
    %s11 = scalar_lea.sflag [#allocation3], 1
    %12 = vsyncpa %s11, 0
    loop: start=0, step=1, limit=4
    $region2: #{downsample1d_pallas.1} parent=1 // loop_pre_header
      _
    $region3: #{downsample1d_pallas.1} parent=1 // loop_header
      %s14 = sphi 0, %s18
      %p15 = scmp.ge.s32.totalorder %s14, 4
      %s21 = sphi 0, %s33
      %s22 = sphi 0, %s29
      %s23 = sphi 0, %s21
      %s24 = sphi 0, %s22
      %s25 = sphi 0, %s23
      %s26 = sphi 0, %s24
      %s38 = sphi 0, %s40
      %s41 = sphi 0, %s38
      %s42 = sphi 0, %s41
      %s58 = sphi 0, %s42
      %s66 = sphi 0, %s68
      %s69 = sphi 0, %s66
      %s70 = sphi 0, %s69
      %s86 = sphi 0, %s70
      %s90 = sphi 0, %s90
      %s92 = sphi 0, %s90
      %s93 = sphi 0, %s92
      %s107 = sphi 0, %s93
      %s111 = sphi 0, %s111
      %s113 = sphi 0, %s111
      %s114 = sphi 0, %s113
      %s128 = sphi 0, %s114
      %s132 = sphi 0, %s132
      %s134 = sphi 0, %s132
      %s135 = sphi 0, %s134
      %s149 = sphi 0, %s135
      %s157 = sphi 0, %s159
      %s160 = sphi 0, %s157
      %s161 = sphi 0, %s160
      %s177 = sphi 0, %s161
    $region4: #{downsample1d_pallas.1} parent=1 // loop_header_branch
      %17 = sbr.rel (%p15) target = $region8
    $region5: #{downsample1d_pallas.1} parent=1 // loop_body
      %s19 = ssub.s32 %s14, 1
      %s20 = ssub.s32 %s14, 2
      %s27 = sadd.s32 1, %s22
      %p28 = scmp.ge.s32.totalorder %s27, 1
      %s29 = scalar_select %p28, 0, %s27
      %s30 = sadd.s32 1, %s21
      %s31 = scalar_select %p28, %s30, %s21
      %p32 = scmp.ge.s32.totalorder %s31, 2
      %s33 = scalar_select %p32, 0, %s31
      %s34 = ssub.s32 %s21, %s33
      %s35 = ssub.s32 %s22, %s29
      %s36 = sor.u32 %s34, %s35
      %p37 = scmp.eq.s32.totalorder %s36, 0
      %s39 = sadd.s32 %s38, 1
      %s40 = scalar_select %p37, %s38, %s39
      %p43 = pneg %p37
      %p44 = scmp.eq.s32.totalorder %s14, 1
      %p45 = por %p43, %p44
      %p46 = scmp.ne.s32.totalorder %s38, %s41
      %p47 = scmp.eq.s32.totalorder %s14, 0
      %p48 = por %p46, %p47
      %p49 = scmp.ne.s32.totalorder %s38, %s41
      %p50 = scmp.eq.s32.totalorder %s19, 1
      %p51 = por %p49, %p50
      %p52 = scmp.ne.s32.totalorder %s41, %s42
      %p53 = scmp.eq.s32.totalorder %s19, 0
      %p54 = por %p52, %p53
      %p55 = scmp.ne.s32.totalorder %s41, %s42
      %p56 = scmp.eq.s32.totalorder %s20, 1
      %p57 = por %p55, %p56
      %p59 = scmp.ne.s32.totalorder %s42, %s58
      %p60 = scmp.eq.s32.totalorder %s20, 0
      %p61 = por %p59, %p60
      %s62 = ssub.s32 %s21, %s33
      %s63 = ssub.s32 %s22, %s29
      %s64 = sor.u32 %s62, %s63
      %p65 = scmp.eq.s32.totalorder %s64, 0
      %s67 = sadd.s32 %s66, 1
      %s68 = scalar_select %p65, %s66, %s67
      %p71 = pneg %p65
      %p72 = scmp.eq.s32.totalorder %s14, 1
      %p73 = por %p71, %p72
      %p74 = scmp.ne.s32.totalorder %s66, %s69
      %p75 = scmp.eq.s32.totalorder %s14, 0
      %p76 = por %p74, %p75
      %p77 = scmp.ne.s32.totalorder %s66, %s69
      %p78 = scmp.eq.s32.totalorder %s19, 1
      %p79 = por %p77, %p78
      %p80 = scmp.ne.s32.totalorder %s69, %s70
      %p81 = scmp.eq.s32.totalorder %s19, 0
      %p82 = por %p80, %p81
      %p83 = scmp.ne.s32.totalorder %s69, %s70
      %p84 = scmp.eq.s32.totalorder %s20, 1
      %p85 = por %p83, %p84
      %p87 = scmp.ne.s32.totalorder %s70, %s86
      %p88 = scmp.eq.s32.totalorder %s20, 0
      %p89 = por %p87, %p88
      %s91 = sadd.s32 %s90, 1
      %p94 = scmp.eq.s32.totalorder %s14, 1
      %p95 = scmp.ne.s32.totalorder %s90, %s92
      %p96 = scmp.eq.s32.totalorder %s14, 0
      %p97 = por %p95, %p96
      %p98 = scmp.ne.s32.totalorder %s90, %s92
      %p99 = scmp.eq.s32.totalorder %s19, 1
      %p100 = por %p98, %p99
      %p101 = scmp.ne.s32.totalorder %s92, %s93
      %p102 = scmp.eq.s32.totalorder %s19, 0
      %p103 = por %p101, %p102
      %p104 = scmp.ne.s32.totalorder %s92, %s93
      %p105 = scmp.eq.s32.totalorder %s20, 1
      %p106 = por %p104, %p105
      %p108 = scmp.ne.s32.totalorder %s93, %s107
      %p109 = scmp.eq.s32.totalorder %s20, 0
      %p110 = por %p108, %p109
      %s112 = sadd.s32 %s111, 1
      %p115 = scmp.eq.s32.totalorder %s14, 1
      %p116 = scmp.ne.s32.totalorder %s111, %s113
      %p117 = scmp.eq.s32.totalorder %s14, 0
      %p118 = por %p116, %p117
      %p119 = scmp.ne.s32.totalorder %s111, %s113
      %p120 = scmp.eq.s32.totalorder %s19, 1
      %p121 = por %p119, %p120
      %p122 = scmp.ne.s32.totalorder %s113, %s114
      %p123 = scmp.eq.s32.totalorder %s19, 0
      %p124 = por %p122, %p123
      %p125 = scmp.ne.s32.totalorder %s113, %s114
      %p126 = scmp.eq.s32.totalorder %s20, 1
      %p127 = por %p125, %p126
      %p129 = scmp.ne.s32.totalorder %s114, %s128
      %p130 = scmp.eq.s32.totalorder %s20, 0
      %p131 = por %p129, %p130
      %s133 = sadd.s32 %s132, 1
      %p136 = scmp.eq.s32.totalorder %s14, 1
      %p137 = scmp.ne.s32.totalorder %s132, %s134
      %p138 = scmp.eq.s32.totalorder %s14, 0
      %p139 = por %p137, %p138
      %p140 = scmp.ne.s32.totalorder %s132, %s134
      %p141 = scmp.eq.s32.totalorder %s19, 1
      %p142 = por %p140, %p141
      %p143 = scmp.ne.s32.totalorder %s134, %s135
      %p144 = scmp.eq.s32.totalorder %s19, 0
      %p145 = por %p143, %p144
      %p146 = scmp.ne.s32.totalorder %s134, %s135
      %p147 = scmp.eq.s32.totalorder %s20, 1
      %p148 = por %p146, %p147
      %p150 = scmp.ne.s32.totalorder %s135, %s149
      %p151 = scmp.eq.s32.totalorder %s20, 0
      %p152 = por %p150, %p151
      %s153 = ssub.s32 %s21, %s33
      %s154 = ssub.s32 %s22, %s29
      %s155 = sor.u32 %s153, %s154
      %p156 = scmp.eq.s32.totalorder %s155, 0
      %s158 = sadd.s32 %s157, 1
      %s159 = scalar_select %p156, %s157, %s158
      %p162 = pneg %p156
      %p163 = scmp.eq.s32.totalorder %s14, 1
      %p164 = por %p162, %p163
      %p165 = scmp.ne.s32.totalorder %s157, %s160
      %p166 = scmp.eq.s32.totalorder %s14, 0
      %p167 = por %p165, %p166
      %p168 = scmp.ne.s32.totalorder %s157, %s160
      %p169 = scmp.eq.s32.totalorder %s19, 1
      %p170 = por %p168, %p169
      %p171 = scmp.ne.s32.totalorder %s160, %s161
      %p172 = scmp.eq.s32.totalorder %s19, 0
      %p173 = por %p171, %p172
      %p174 = scmp.ne.s32.totalorder %s160, %s161
      %p175 = scmp.eq.s32.totalorder %s20, 1
      %p176 = por %p174, %p175
      %p178 = scmp.ne.s32.totalorder %s161, %s177
      %p179 = scmp.eq.s32.totalorder %s20, 0
      %p180 = por %p178, %p179
      %p181 = scmp.le.s32.totalorder 1, %s14
      %p182 = scmp.lt.s32.totalorder %s14, 3
      %p183 = pnand %p181, %p182
      %p184 = pneg %p183
      // Predicated region
      $region9: #{downsample1d_pallas.1} parent=5 // pred_check
        _
      $region10: #{downsample1d_pallas.1} parent=5 // pred_check_branch
        %186 = sbr.rel (%p183) target = $region12
      $region11: #{downsample1d_pallas.1} parent=5 // pred_region
        %s187 = ssub.s32 %s14, 1
        // Predicated region
        $region13: #{downsample1d_pallas.1} parent=11 // pred_check
          %p188 = pneg %p103
        $region14: #{downsample1d_pallas.1} parent=11 // pred_check_branch
          %190 = sbr.rel (%p188) target = $region16
        $region15: #{downsample1d_pallas.1} parent=11 // pred_region
          _
        $region16: #{downsample1d_pallas.1} parent=11 // pred_fallthru
          _
        // Predicated region
        $region17: #{downsample1d_pallas.1} parent=11 // pred_check
          %p191 = pneg %p124
        $region18: #{downsample1d_pallas.1} parent=11 // pred_check_branch
          %193 = sbr.rel (%p191) target = $region20
        $region19: #{downsample1d_pallas.1} parent=11 // pred_region
          _
        $region20: #{downsample1d_pallas.1} parent=11 // pred_fallthru
          _
        // Predicated region
        $region21: #{downsample1d_pallas.1} parent=11 // pred_check
          %p194 = pneg %p145
        $region22: #{downsample1d_pallas.1} parent=11 // pred_check_branch
          %196 = sbr.rel (%p194) target = $region24
        $region23: #{downsample1d_pallas.1} parent=11 // pred_region
          _
        $region24: #{downsample1d_pallas.1} parent=11 // pred_fallthru
          _
      $region12: #{downsample1d_pallas.1} parent=5 // pred_fallthru
        _
      %p197 = scmp.lt.s32.totalorder %s14, 2
      // Predicated region
      $region25: #{downsample1d_pallas.1} parent=5 // pred_check
        %p198 = pneg %p197
      $region26: #{downsample1d_pallas.1} parent=5 // pred_check_branch
        %200 = sbr.rel (%p198) target = $region28
      $region27: #{downsample1d_pallas.1} parent=5 // pred_region
        // Predicated region
        $region29: #{downsample1d_pallas.1} parent=27 // pred_check
          %p201 = pneg %p48
        $region30: #{downsample1d_pallas.1} parent=27 // pred_check_branch
          %203 = sbr.rel (%p201) target = $region32
        $region31: #{downsample1d_pallas.1} parent=27 // pred_region
          %p204 = scmp.lt.s32.totalorder %s21, 1
          %s205 = scalar_select %p204, %s21, 1
          %p206 = scmp.lt.s32.totalorder %s22, 0
          %s207 = scalar_select %p206, %s22, 0
          %s208 = sadd.s32 %s207, %s205
          %s209 = smul.addr %s208, 8
          %s210 = scalar_lea.vmem %s0, %s209
        $region32: #{downsample1d_pallas.1} parent=27 // pred_fallthru
          _
        // Predicated region
        $region33: #{downsample1d_pallas.1} parent=27 // pred_check
          %p211 = pneg %p76
        $region34: #{downsample1d_pallas.1} parent=27 // pred_check_branch
          %213 = sbr.rel (%p211) target = $region36
        $region35: #{downsample1d_pallas.1} parent=27 // pred_region
          %p214 = scmp.lt.s32.totalorder %s21, 1
          %s215 = scalar_select %p214, %s21, 1
          %p216 = scmp.lt.s32.totalorder %s22, 0
          %s217 = scalar_select %p216, %s22, 0
          %s218 = sadd.s32 %s217, %s215
          %s219 = scalar_lea.vmem %s1, %s218
        $region36: #{downsample1d_pallas.1} parent=27 // pred_fallthru
          _
      $region28: #{downsample1d_pallas.1} parent=5 // pred_fallthru
        _
      %p220 = scmp.le.s32.totalorder 1, %s14
      %p221 = scmp.lt.s32.totalorder %s14, 3
      %p222 = pnand %p220, %p221
      %p223 = pneg %p222
      // Predicated region
      $region37: #{downsample1d_pallas.1} parent=5 // pred_check
        _
      $region38: #{downsample1d_pallas.1} parent=5 // pred_check_branch
        %225 = sbr.rel (%p222) target = $region40
      $region39: #{downsample1d_pallas.1} parent=5 // pred_region
        %s226 = ssub.s32 %s14, 1
        %p227 = scmp.lt.s32.totalorder %s23, 1
        %s228 = scalar_select %p227, %s23, 1
        %p229 = scmp.lt.s32.totalorder %s24, 0
        %s230 = scalar_select %p229, %s24, 0
        %s231 = sadd.s32 %s230, %s228
        %s232 = smul.addr %s231, 8
        %s233 = scalar_lea.vmem %s0, %s232
        %p234 = pneg %p54
        %p235 = pneg %p51
        %p236 = scmp.lt.s32.totalorder %s23, 1
        %s237 = scalar_select %p236, %s23, 1
        %p238 = scmp.lt.s32.totalorder %s24, 0
        %s239 = scalar_select %p238, %s24, 0
        %s240 = sadd.s32 %s239, %s237
        %s241 = scalar_lea.vmem %s1, %s240
        %p242 = pneg %p82
        %p243 = pneg %p79
        %p244 = pneg %p103
        %p245 = pneg %p100
        %p246 = pneg %p124
        %p247 = pneg %p121
        %p248 = pneg %p145
        %p249 = pneg %p142
        %p250 = pneg %p173
        %p251 = pneg %p170
        %s252 = sand.u32 %s160, 1
        %s253 = scalar_lea.sflag [#allocation3], %s252
        %s254 = sand.u32 %s160, 1
        %s255 = smul.addr %s254, 4
        %s256 = scalar_lea.vmem [#allocation2], %s255
        %p257 = scmp.lt.s32.totalorder %s23, 1
        %s258 = scalar_select %p257, %s23, 1
        %p259 = scmp.lt.s32.totalorder %s24, 0
        %s260 = scalar_select %p259, %s24, 0
        %s261 = sadd.s32 %s260, %s258
        %s262 = smul.addr %s261, 8
        %s263 = scalar_lea.vmem %s0, %s262
        %p264 = scmp.lt.s32.totalorder %s23, 1
        %s265 = scalar_select %p264, %s23, 1
        %p266 = scmp.lt.s32.totalorder %s24, 0
        %s267 = scalar_select %p266, %s24, 0
        %s268 = sadd.s32 %s267, %s265
        %s269 = scalar_lea.vmem %s1, %s268
        %v270 = vld [vmem:[%s263] sm:$0xff]
        %v271 = vld [vmem:[%s2] sm:$0xff]
        %v272 = vld [vmem:[%s269] sm:$0x1]
        %v274 = vrot.slane %v270, 1
        %v277 = vlaneseq
        %v278 = vshrl.u32 %v277, 7
        %v279 = vsub.s32 0, %v278
        %v280 = vrot.slane %v272, %v279
        %vm282 = vcmask 1046528
        %v283 = vsel %vm282, %v274, %v280
        %v284 = vld [vmem:[%s3] sm:$0xf]
        %vm285 = vcmask 31744
        %v287 = vsel %vm285, %v283, 0
        %vm289 = vcmask 1043456
        %v291 = vsel %vm289, %v284, 0
        %293 = vmatprep.subr.mxu0 0.0
        %294 = vmatpush1.msra.mxu0 %v291
        %295 = vmatprep.subr.mxu0 0.0
        %296 = vmatpush1.msra.mxu0 0.0
        %297 = vmatprep.subr.mxu0 0.0
        %298 = vmatpush1.msra.mxu0 0.0
        %299 = vmatprep.subr.mxu0 0.0
        %300 = vmatpush1.msra.mxu0 0.0
        %301 = vmatprep.subr.mxu0 0.0
        %302 = vmatpush1.msra.mxu0 0.0
        %303 = vmatprep.subr.mxu0 0.0
        %304 = vmatpush1.msra.mxu0 0.0
        %305 = vmatprep.subr.mxu0 0.0
        %306 = vmatpush1.msra.mxu0 0.0
        %307 = vmatprep.subr.mxu0 0.0
        %308 = vmatpush1.msra.mxu0 0.0
        %309 = vmatprep.subr.mxu0 0.0
        %310 = vmatpush1.msra.mxu0 0.0
        %311 = vmatprep.subr.mxu0 0.0
        %312 = vmatpush1.msra.mxu0 0.0
        %313 = vmatprep.subr.mxu0 0.0
        %314 = vmatpush1.msra.mxu0 0.0
        %315 = vmatprep.subr.mxu0 0.0
        %316 = vmatpush1.msra.mxu0 0.0
        %317 = vmatprep.subr.mxu0 0.0
        %318 = vmatpush1.msra.mxu0 0.0
        %319 = vmatprep.subr.mxu0 0.0
        %320 = vmatpush1.msra.mxu0 0.0
        %321 = vmatprep.subr.mxu0 0.0
        %322 = vmatpush1.msra.mxu0 0.0
        %323 = vmatprep.subr.mxu0 0.0
        %324 = vmatpush1.msra.mxu0 0.0
        %325 = vmatprep.subr.mxu0 0.0
        %326 = vmatpush1.msra.mxu0 0.0
        %327 = vmatprep.subr.mxu0 0.0
        %328 = vmatpush1.msra.mxu0 0.0
        %329 = vmatprep.subr.mxu0 0.0
        %330 = vmatpush1.msra.mxu0 0.0
        %331 = vmatprep.subr.mxu0 0.0
        %332 = vmatpush1.msra.mxu0 0.0
        %333 = vmatprep.subr.mxu0 0.0
        %334 = vmatpush1.msra.mxu0 0.0
        %335 = vmatprep.subr.mxu0 0.0
        %336 = vmatpush1.msra.mxu0 0.0
        %337 = vmatprep.subr.mxu0 0.0
        %338 = vmatpush1.msra.mxu0 0.0
        %339 = vmatprep.subr.mxu0 0.0
        %340 = vmatpush1.msra.mxu0 0.0
        %341 = vmatprep.subr.mxu0 0.0
        %342 = vmatpush1.msra.mxu0 0.0
        %343 = vmatprep.subr.mxu0 0.0
        %344 = vmatpush1.msra.mxu0 0.0
        %345 = vmatprep.subr.mxu0 0.0
        %346 = vmatpush1.msra.mxu0 0.0
        %347 = vmatprep.subr.mxu0 0.0
        %348 = vmatpush1.msra.mxu0 0.0
        %349 = vmatprep.subr.mxu0 0.0
        %350 = vmatpush1.msra.mxu0 0.0
        %351 = vmatprep.subr.mxu0 0.0
        %352 = vmatpush1.msra.mxu0 0.0
        %353 = vmatprep.subr.mxu0 0.0
        %354 = vmatpush1.msra.mxu0 0.0
        %355 = vmatprep.subr.mxu0 0.0
        %356 = vmatpush1.msra.mxu0 0.0
        %357 = vmatprep.mubr.f32.mxu0 0.0
        %358 = vmatmul.mubr.f32.gmra.mrb[0].mxu0 %v287
        %v359 = vpop.f32.mrb[0].mxu0
        %v360 = vadd.f32 0.0, %v359
        %v361 = vpop.f32.mrb[0].mxu0
        %362 = vdwg.mxu0
        %vm363 = vcmask 64512
        %v364 = vsel %vm363, %v270, 0
        %366 = vmatprep.subr.mxu0 0.0
        %367 = vmatpush1.msra.mxu0 %v271
        %368 = vmatprep.subr.mxu0 0.0
        %369 = vmatpush1.msra.mxu0 0.0
        %370 = vmatprep.subr.mxu0 0.0
        %371 = vmatpush1.msra.mxu0 0.0
        %372 = vmatprep.subr.mxu0 0.0
        %373 = vmatpush1.msra.mxu0 0.0
        %374 = vmatprep.subr.mxu0 0.0
        %375 = vmatpush1.msra.mxu0 0.0
        %376 = vmatprep.subr.mxu0 0.0
        %377 = vmatpush1.msra.mxu0 0.0
        %378 = vmatprep.subr.mxu0 0.0
        %379 = vmatpush1.msra.mxu0 0.0
        %380 = vmatprep.subr.mxu0 0.0
        %381 = vmatpush1.msra.mxu0 0.0
        %382 = vmatprep.subr.mxu0 0.0
        %383 = vmatpush1.msra.mxu0 0.0
        %384 = vmatprep.subr.mxu0 0.0
        %385 = vmatpush1.msra.mxu0 0.0
        %386 = vmatprep.subr.mxu0 0.0
        %387 = vmatpush1.msra.mxu0 0.0
        %388 = vmatprep.subr.mxu0 0.0
        %389 = vmatpush1.msra.mxu0 0.0
        %390 = vmatprep.subr.mxu0 0.0
        %391 = vmatpush1.msra.mxu0 0.0
        %392 = vmatprep.subr.mxu0 0.0
        %393 = vmatpush1.msra.mxu0 0.0
        %394 = vmatprep.subr.mxu0 0.0
        %395 = vmatpush1.msra.mxu0 0.0
        %396 = vmatprep.subr.mxu0 0.0
        %397 = vmatpush1.msra.mxu0 0.0
        %398 = vmatprep.subr.mxu0 0.0
        %399 = vmatpush1.msra.mxu0 0.0
        %400 = vmatprep.subr.mxu0 0.0
        %401 = vmatpush1.msra.mxu0 0.0
        %402 = vmatprep.subr.mxu0 0.0
        %403 = vmatpush1.msra.mxu0 0.0
        %404 = vmatprep.subr.mxu0 0.0
        %405 = vmatpush1.msra.mxu0 0.0
        %406 = vmatprep.subr.mxu0 0.0
        %407 = vmatpush1.msra.mxu0 0.0
        %408 = vmatprep.subr.mxu0 0.0
        %409 = vmatpush1.msra.mxu0 0.0
        %410 = vmatprep.subr.mxu0 0.0
        %411 = vmatpush1.msra.mxu0 0.0
        %412 = vmatprep.subr.mxu0 0.0
        %413 = vmatpush1.msra.mxu0 0.0
        %414 = vmatprep.subr.mxu0 0.0
        %415 = vmatpush1.msra.mxu0 0.0
        %416 = vmatprep.subr.mxu0 0.0
        %417 = vmatpush1.msra.mxu0 0.0
        %418 = vmatprep.subr.mxu0 0.0
        %419 = vmatpush1.msra.mxu0 0.0
        %420 = vmatprep.subr.mxu0 0.0
        %421 = vmatpush1.msra.mxu0 0.0
        %422 = vmatprep.subr.mxu0 0.0
        %423 = vmatpush1.msra.mxu0 0.0
        %424 = vmatprep.subr.mxu0 0.0
        %425 = vmatpush1.msra.mxu0 0.0
        %426 = vmatprep.subr.mxu0 0.0
        %427 = vmatpush1.msra.mxu0 0.0
        %428 = vmatprep.subr.mxu0 0.0
        %429 = vmatpush1.msra.mxu0 0.0
        %430 = vmatprep.mubr.f32.mxu0 0.0
        %431 = vmatmul.mubr.f32.gmra.mrb[0].mxu0 %v364
        %v432 = vpop.f32.mrb[0].mxu0
        %v433 = vadd.f32 %v360, %v432
        %v434 = vpop.f32.mrb[0].mxu0
        %435 = vdwg.mxu0
        %v436 = vld [vmem:[%s4] sm:$0x1]
        %v438 = vlaneseq
        %v439 = vshrl.u32 %v438, 7
        %v440 = vsub.s32 0, %v439
        %v441 = vrot.slane %v436, %v440
        %v443 = vadd.f32 %v433, %v441
        %444 = vxpose.xlu0.b32.start [1/16] %v443, 128
        %445 = vxpose.xlu0.b32.cont [2/16] 0.0, 128
        %446 = vxpose.xlu0.b32.cont [3/16] 0.0, 128
        %447 = vxpose.xlu0.b32.cont [4/16] 0.0, 128
        %448 = vxpose.xlu0.b32.cont [5/16] 0.0, 128
        %449 = vxpose.xlu0.b32.cont [6/16] 0.0, 128
        %450 = vxpose.xlu0.b32.cont [7/16] 0.0, 128
        %451 = vxpose.xlu0.b32.cont [8/16] 0.0, 128
        %452 = vxpose.xlu0.b32.cont [9/16] 0.0, 128
        %453 = vxpose.xlu0.b32.cont [10/16] 0.0, 128
        %454 = vxpose.xlu0.b32.cont [11/16] 0.0, 128
        %455 = vxpose.xlu0.b32.cont [12/16] 0.0, 128
        %456 = vxpose.xlu0.b32.cont [13/16] 0.0, 128
        %457 = vxpose.xlu0.b32.cont [14/16] 0.0, 128
        %458 = vxpose.xlu0.b32.cont [15/16] 0.0, 128
        %459 = vxpose.xlu0.b32.end [16/16] 0.0, 128
        %v460 = vpop.trf.xlu0
        %v461 = vpop.trf.xlu0
        %v462 = vpop.trf.xlu0
        %v463 = vpop.trf.xlu0
        %v464 = vpop.trf.xlu0
        %v465 = vpop.trf.xlu0
        %v466 = vpop.trf.xlu0
        %v467 = vpop.trf.xlu0
        %v468 = vpop.trf.xlu0
        %v469 = vpop.trf.xlu0
        %v470 = vpop.trf.xlu0
        %v471 = vpop.trf.xlu0
        %v472 = vpop.trf.xlu0
        %v473 = vpop.trf.xlu0
        %v474 = vpop.trf.xlu0
        %v475 = vpop.trf.xlu0
        %vm476 = vcmask 60416
        %477 = vst.msk [vmem:[%s256] sm:$0xf] %vm476, %v460
        %s478 = sand.u32 %s160, 1
        %s479 = scalar_lea.sflag [#allocation3], %s478
        %s480 = sand.u32 %s160, 1
        %s481 = smul.addr %s480, 4
        %s482 = scalar_lea.vmem [#allocation2], %s481
        // Predicated region
        $region41: #{downsample1d_pallas.1} parent=39 // pred_check
          %p483 = pneg %p170
        $region42: #{downsample1d_pallas.1} parent=39 // pred_check_branch
          %485 = sbr.rel (%p483) target = $region44
        $region43: #{downsample1d_pallas.1} parent=39 // pred_region
          %s487 = ssub.s32 64, 64
          %488 = vsyncadd %s479, %s487
          %s489 = sadd.s32 %s24, %s23
          %s490 = smul.addr %s489, 64
          %s491 = scalar_lea.hbm %s5, %s490
          %s493 = sshll.u32 %s482, 4
          %s494 = int_to_ptr.vmem [resolvable:$true] %s493
          %496 = dma.vmem_to_hbm [thread:$0]  %s494, 64, %s491, %s479
        $region44: #{downsample1d_pallas.1} parent=39 // pred_fallthru
          _
      $region40: #{downsample1d_pallas.1} parent=5 // pred_fallthru
        _
      %p497 = scmp.le.s32.totalorder 2, %s14
      // Predicated region
      $region45: #{downsample1d_pallas.1} parent=5 // pred_check
        %p498 = pneg %p497
      $region46: #{downsample1d_pallas.1} parent=5 // pred_check_branch
        %500 = sbr.rel (%p498) target = $region48
      $region47: #{downsample1d_pallas.1} parent=5 // pred_region
        %s501 = ssub.s32 %s14, 2
        // Predicated region
        $region49: #{downsample1d_pallas.1} parent=47 // pred_check
          %p502 = pneg %p176
        $region50: #{downsample1d_pallas.1} parent=47 // pred_check_branch
          %504 = sbr.rel (%p502) target = $region52
        $region51: #{downsample1d_pallas.1} parent=47 // pred_region
          %s505 = sand.u32 %s161, 1
          %s506 = scalar_lea.sflag [#allocation3], %s505
          %s507 = sand.u32 %s161, 1
          %s508 = smul.addr %s507, 4
          %s509 = scalar_lea.vmem [#allocation2], %s508
          %510 = dma.done %s506, 64
        $region52: #{downsample1d_pallas.1} parent=47 // pred_fallthru
          _
      $region48: #{downsample1d_pallas.1} parent=5 // pred_fallthru
        _
    $region6: #{downsample1d_pallas.1} parent=1 // loop_footer
      %s18 = sadd.s32 1, %s14
    $region7: #{downsample1d_pallas.1} parent=1 // loop_footer_branch
      %13 = sbr.rel target = $region3
    $region8: #{downsample1d_pallas.1} parent=1 // loop_exit
      _
    %511 = vsyncpa [#allocation3], 1
    %s512 = scalar_lea.sflag [#allocation3], 1
    %513 = vsyncpa %s512, 1

</llo_original>
